<compile_context>
chip_gen: v7x
topology: tpu7x:2x2x1
jax: 0.10.0
libtpu: 0.0.40
codegen_flags: <defaults>
</compile_context>

<pallas_src>
import functools

import jax
import jax.numpy as jnp
from jax.experimental import pallas as pl
from jax.experimental.pallas import tpu as pltpu


def multitask_kernel(x_ref,
                     w_s1_ref, b_s1_ref,
                     w_mid_ref, b_mid_ref,
                     w_hb_ref, b_hb_ref,
                     out_ref, *, shared_size):
    x = x_ref[...]
    w_dtype = w_s1_ref.dtype

    # Packed mid-layer weights/biases: [w_s2 | w_ha] and [b_s2 | b_ha].
    w_mid = w_mid_ref[...]
    b_mid = b_mid_ref[...]
    w_s2 = w_mid[:, :shared_size]
    w_ha = w_mid[:, shared_size:]
    b_s2 = b_mid[:, :shared_size]
    b_ha = b_mid[:, shared_size:]

    # shared_layer: Linear -> ReLU -> Linear -> ReLU   (f32 accumulate / f32 epilogue)
    h = jnp.dot(x, w_s1_ref[...], preferred_element_type=jnp.float32) + b_s1_ref[...]
    h = jnp.maximum(h, 0.0)
    h = jnp.dot(h.astype(w_dtype), w_s2, preferred_element_type=jnp.float32) + b_s2
    h = jnp.maximum(h, 0.0)

    # Fused task heads: one dot against the concatenated head weights, ReLU,
    # then one dot against the block-diagonal final weight -> (tb, 2) logits.
    t = jnp.dot(h.astype(w_dtype), w_ha, preferred_element_type=jnp.float32) + b_ha
    t = jnp.maximum(t, 0.0)
    logits = jnp.dot(t.astype(w_dtype), w_hb_ref[...],
                     preferred_element_type=jnp.float32) + b_hb_ref[...]

    # Lane-dense store: (tb, 2) -> (2, tb); batch lives on the 128-lane axis.
    # The transpose uses the XLU slot, which is otherwise idle here.
    out_ref[...] = jnp.transpose(jax.nn.sigmoid(logits))


def _pack_params(params, compute_dtype):
    """Fuse the two heads and pack mid-layer operands; returns kernel operands."""
    w_s2, b_s2 = params["w_s2"], params["b_s2"]           # (S, S), (1, S)
    w_t1a, b_t1a = params["w_t1a"], params["b_t1a"]       # (S, T1), (1, T1)
    w_t2a, b_t2a = params["w_t2a"], params["b_t2a"]       # (S, T2), (1, T2)
    w_t1b, b_t1b = params["w_t1b"], params["b_t1b"]       # (T1, 1), (1, 1)
    w_t2b, b_t2b = params["w_t2b"], params["b_t2b"]       # (T2, 1), (1, 1)

    t1 = w_t1a.shape[1]
    t2 = w_t2a.shape[1]
    shared_size = w_s2.shape[1]

    # Fused head-A (shared -> concat(task1, task2)) and packed mid-layer buffer.
    w_ha = jnp.concatenate([w_t1a, w_t2a], axis=1)         # (S, T1+T2)
    b_ha = jnp.concatenate([b_t1a, b_t2a], axis=1)         # (1, T1+T2)
    w_mid = jnp.concatenate([w_s2, w_ha], axis=1)          # (S, S+T1+T2)
    b_mid = jnp.concatenate([b_s2, b_ha], axis=1)          # (1, S+T1+T2)

    # Block-diagonal head-B: task1 -> column 0, task2 -> column 1 (exact).
    w_hb = jnp.zeros((t1 + t2, 2), jnp.float32)
    w_hb = w_hb.at[:t1, 0].set(w_t1b[:, 0])
    w_hb = w_hb.at[t1:, 1].set(w_t2b[:, 0])
    b_hb = jnp.concatenate([b_t1b, b_t2b], axis=1)         # (1, 2)

    operands = (
        params["w_s1"].astype(compute_dtype),
        params["b_s1"].astype(jnp.float32),
        w_mid.astype(compute_dtype),
        b_mid.astype(jnp.float32),
        w_hb.astype(compute_dtype),
        b_hb.astype(jnp.float32),
    )
    return operands, shared_size


def _pick_tb(batch, tb_max):
    """Batch tile selection.

    - Small batches (<=128): one full-extent tile (the full-dims exemption
      covers the (8,128) block constraint, so no rounding is needed).
    - Otherwise: a multiple of 128 (so the (2, tb) output block is
      lane-aligned), capped at tb_max, and sized so there are >= 2 grid steps
      (lets v7x's two TensorCores split the "parallel" batch axis).
    """
    if batch <= 128:
        return batch
    half = pl.cdiv(batch, 2)
    half = ((half + 127) // 128) * 128
    return min(tb_max, half)


def multitask_forward(x, params, *, tb_max=2048, compute_dtype=jnp.float32):
    """x: (B, input_size). Returns (task1_out, task2_out), each (B, 1) float32.

    tb_max: batch-tile cap (review suggests sweeping 1024-4096; 2048 default).
    compute_dtype: dtype for x / weight streaming (jnp.bfloat16 halves HBM
    traffic; accumulation and the epilogue stay in float32).
    """
    B, input_size = x.shape
    operands, shared_size = _pack_params(params, compute_dtype)
    x = x.astype(compute_dtype)

    tb = _pick_tb(B, tb_max)
    n_tiles = pl.cdiv(B, tb)     # no host-side pad: Pallas clamps the ragged last block

    batch_map = lambda i: (i, 0)     # x tiles march over the batch (sublane axis)
    out_map = lambda i: (0, i)       # output tiles march over the batch (lane axis)
    const_map = lambda i: (0, 0)     # weights/biases stay VMEM-resident

    in_specs = [pl.BlockSpec((tb, input_size), batch_map)]
    in_specs += [pl.BlockSpec(op.shape, const_map) for op in operands]
    out_specs = pl.BlockSpec((2, tb), out_map)

    kernel = functools.partial(multitask_kernel, shared_size=shared_size)

    out = pl.pallas_call(
        kernel,
        grid=(n_tiles,),
        in_specs=in_specs,
        out_specs=out_specs,
        out_shape=jax.ShapeDtypeStruct((2, B), jnp.float32),
        compiler_params=pltpu.CompilerParams(
            # TODO(synk): verify in an xprof trace that "parallel" shards the
            # batch axis across both v7x TensorCores; if not, switch to a
            # core_map / CORE_PARALLEL split.
            dimension_semantics=("parallel",)),
    )(x, *operands)

    # task1 in row 0, task2 in row 1.
    return out[0][:, None], out[1][:, None]


def init_linear(key, fan_in, fan_out):
    """PyTorch nn.Linear-style init; returns (in,out) weight and (1,out) bias."""
    kw, kb = jax.random.split(key)
    bound = 1.0 / jnp.sqrt(float(fan_in))
    w = jax.random.uniform(kw, (fan_in, fan_out), jnp.float32, -bound, bound)
    b = jax.random.uniform(kb, (1, fan_out), jnp.float32, -bound, bound)
    return w, b


def init_params(key, input_size, shared_size, task1_size, task2_size):
    keys = jax.random.split(key, 6)
    p = {}
    p["w_s1"], p["b_s1"] = init_linear(keys[0], input_size, shared_size)
    p["w_s2"], p["b_s2"] = init_linear(keys[1], shared_size, shared_size)
    p["w_t1a"], p["b_t1a"] = init_linear(keys[2], shared_size, task1_size)
    p["w_t1b"], p["b_t1b"] = init_linear(keys[3], task1_size, 1)
    p["w_t2a"], p["b_t2a"] = init_linear(keys[4], shared_size, task2_size)
    p["w_t2b"], p["b_t2b"] = init_linear(keys[5], task2_size, 1)
    return p


def reference_forward(x, p):
    """Plain-JAX reference (unfused heads) for sanity checking."""
    h = jnp.maximum(x @ p["w_s1"] + p["b_s1"], 0.0)
    h = jnp.maximum(h @ p["w_s2"] + p["b_s2"], 0.0)
    t1 = jnp.maximum(h @ p["w_t1a"] + p["b_t1a"], 0.0) @ p["w_t1b"] + p["b_t1b"]
    t2 = jnp.maximum(h @ p["w_t2a"] + p["b_t2a"], 0.0) @ p["w_t2b"] + p["b_t2b"]
    return jax.nn.sigmoid(t1), jax.nn.sigmoid(t2)


if __name__ == "__main__":
    INPUT_SIZE, SHARED_SIZE, TASK1_SIZE, TASK2_SIZE = 16, 32, 16, 16

    key = jax.random.PRNGKey(0)
    kp, k1, k2, k3 = jax.random.split(key, 4)
    params = init_params(kp, INPUT_SIZE, SHARED_SIZE, TASK1_SIZE, TASK2_SIZE)

    # B=8   : single full-extent tile (small-batch path).
    # B=300 : two 256-row tiles, ragged last block, no host pad.
    # B=4500: tb hits the 2048 cap, three grid steps.
    for batch, kk in ((8, k1), (300, k2), (4500, k3)):
        x = jax.random.normal(kk, (batch, INPUT_SIZE), jnp.float32)
        o1, o2 = multitask_forward(x, params)
        jax.block_until_ready((o1, o2))
        r1, r2 = reference_forward(x, params)
        assert o1.shape == (batch, 1) and o2.shape == (batch, 1)
        assert jnp.allclose(o1, r1, atol=1e-5), f"task1 mismatch (B={batch})"
        assert jnp.allclose(o2, r2, atol=1e-5), f"task2 mismatch (B={batch})"

    # Optional bf16 streaming path (f32 accumulate), looser tolerance.
    xb = jax.random.normal(k2, (300, INPUT_SIZE), jnp.float32)
    b1, b2 = multitask_forward(xb, params, compute_dtype=jnp.bfloat16)
    jax.block_until_ready((b1, b2))
    r1, r2 = reference_forward(xb, params)
    assert jnp.allclose(b1, r1, atol=5e-2), "task1 mismatch (bf16)"
    assert jnp.allclose(b2, r2, atol=5e-2), "task2 mismatch (bf16)"

    print("KERNEL_OK")
</pallas_src>

<mosaic_0001>
module attributes {stable_mosaic.version = 11 : i64} {
  func.func @multitask_kernel(%arg0: i32, %arg1: memref<8x16xf32, #tpu.memory_space<vmem>>, %arg2: memref<16x32xf32, #tpu.memory_space<vmem>>, %arg3: memref<1x32xf32, #tpu.memory_space<vmem>>, %arg4: memref<32x64xf32, #tpu.memory_space<vmem>>, %arg5: memref<1x64xf32, #tpu.memory_space<vmem>>, %arg6: memref<32x2xf32, #tpu.memory_space<vmem>>, %arg7: memref<1x2xf32, #tpu.memory_space<vmem>>, %arg8: memref<2x8xf32, #tpu.memory_space<vmem>>) attributes {dimension_semantics = [#tpu.dimension_semantics<parallel>], iteration_bounds = array<i64: 1>, scalar_prefetch = 0 : i64, scratch_operands = 0 : i64, tpu.core_type = #tpu.core_type<tc>, window_params = [{transform_indices = @transform_0, window_bounds = array<i64: 8, 16>}, {pipeline_mode = #tpu.pipeline_mode<synchronous>, transform_indices = @transform_1, window_bounds = array<i64: 16, 32>}, {pipeline_mode = #tpu.pipeline_mode<synchronous>, transform_indices = @transform_2, window_bounds = array<i64: 1, 32>}, {pipeline_mode = #tpu.pipeline_mode<synchronous>, transform_indices = @transform_3, window_bounds = array<i64: 32, 64>}, {pipeline_mode = #tpu.pipeline_mode<synchronous>, transform_indices = @transform_4, window_bounds = array<i64: 1, 64>}, {pipeline_mode = #tpu.pipeline_mode<synchronous>, transform_indices = @transform_5, window_bounds = array<i64: 32, 2>}, {pipeline_mode = #tpu.pipeline_mode<synchronous>, transform_indices = @transform_6, window_bounds = array<i64: 1, 2>}, {transform_indices = @transform_7, window_bounds = array<i64: 2, 8>}]} {
    %c0 = arith.constant 0 : index
    %c0_0 = arith.constant 0 : index
    %0 = vector.load %arg1[%c0, %c0_0] : memref<8x16xf32, #tpu.memory_space<vmem>>, vector<8x16xf32>
    %c0_1 = arith.constant 0 : index
    %c0_2 = arith.constant 0 : index
    %1 = vector.load %arg4[%c0_1, %c0_2] : memref<32x64xf32, #tpu.memory_space<vmem>>, vector<32x64xf32>
    %c0_3 = arith.constant 0 : index
    %c0_4 = arith.constant 0 : index
    %2 = vector.load %arg5[%c0_3, %c0_4] : memref<1x64xf32, #tpu.memory_space<vmem>>, vector<1x64xf32>
    %3 = vector.extract_strided_slice %1 {offsets = [0, 0], sizes = [32, 32], strides = [1, 1]} : vector<32x64xf32> to vector<32x32xf32>
    %4 = vector.extract_strided_slice %1 {offsets = [0, 32], sizes = [32, 32], strides = [1, 1]} : vector<32x64xf32> to vector<32x32xf32>
    %5 = vector.extract_strided_slice %2 {offsets = [0, 0], sizes = [1, 32], strides = [1, 1]} : vector<1x64xf32> to vector<1x32xf32>
    %6 = vector.extract_strided_slice %2 {offsets = [0, 32], sizes = [1, 32], strides = [1, 1]} : vector<1x64xf32> to vector<1x32xf32>
    %c0_5 = arith.constant 0 : index
    %c0_6 = arith.constant 0 : index
    %7 = vector.load %arg2[%c0_5, %c0_6] : memref<16x32xf32, #tpu.memory_space<vmem>>, vector<16x32xf32>
    %cst = arith.constant dense<0.000000e+00> : vector<8x32xf32>
    %8 = tpu.matmul %0, %7, %cst {dimension_numbers = #tpu.dot_dimension_numbers<[1], [0], [0], [1], [0, 0, 1, 1], [], []>} : vector<8x16xf32>, vector<16x32xf32>, vector<8x32xf32> -> vector<8x32xf32>
    %c0_7 = arith.constant 0 : index
    %c0_8 = arith.constant 0 : index
    %9 = vector.load %arg3[%c0_7, %c0_8] : memref<1x32xf32, #tpu.memory_space<vmem>>, vector<1x32xf32>
    %10 = vector.broadcast %9 : vector<1x32xf32> to vector<8x32xf32>
    %11 = arith.addf %8, %10 : vector<8x32xf32>
    %cst_9 = arith.constant 0.000000e+00 : f32
    %12 = vector.broadcast %cst_9 : f32 to vector<8x32xf32>
    %13 = arith.maximumf %11, %12 : vector<8x32xf32>
    %cst_10 = arith.constant dense<0.000000e+00> : vector<8x32xf32>
    %14 = tpu.matmul %13, %3, %cst_10 {dimension_numbers = #tpu.dot_dimension_numbers<[1], [0], [0], [1], [0, 0, 1, 1], [], []>} : vector<8x32xf32>, vector<32x32xf32>, vector<8x32xf32> -> vector<8x32xf32>
    %15 = vector.broadcast %5 : vector<1x32xf32> to vector<8x32xf32>
    %16 = arith.addf %14, %15 : vector<8x32xf32>
    %cst_11 = arith.constant 0.000000e+00 : f32
    %17 = vector.broadcast %cst_11 : f32 to vector<8x32xf32>
    %18 = arith.maximumf %16, %17 : vector<8x32xf32>
    %cst_12 = arith.constant dense<0.000000e+00> : vector<8x32xf32>
    %19 = tpu.matmul %18, %4, %cst_12 {dimension_numbers = #tpu.dot_dimension_numbers<[1], [0], [0], [1], [0, 0, 1, 1], [], []>} : vector<8x32xf32>, vector<32x32xf32>, vector<8x32xf32> -> vector<8x32xf32>
    %20 = vector.broadcast %6 : vector<1x32xf32> to vector<8x32xf32>
    %21 = arith.addf %19, %20 : vector<8x32xf32>
    %cst_13 = arith.constant 0.000000e+00 : f32
    %22 = vector.broadcast %cst_13 : f32 to vector<8x32xf32>
    %23 = arith.maximumf %21, %22 : vector<8x32xf32>
    %c0_14 = arith.constant 0 : index
    %c0_15 = arith.constant 0 : index
    %24 = vector.load %arg6[%c0_14, %c0_15] : memref<32x2xf32, #tpu.memory_space<vmem>>, vector<32x2xf32>
    %cst_16 = arith.constant dense<0.000000e+00> : vector<8x2xf32>
    %25 = tpu.matmul %23, %24, %cst_16 {dimension_numbers = #tpu.dot_dimension_numbers<[1], [0], [0], [1], [0, 0, 1, 1], [], []>} : vector<8x32xf32>, vector<32x2xf32>, vector<8x2xf32> -> vector<8x2xf32>
    %c0_17 = arith.constant 0 : index
    %c0_18 = arith.constant 0 : index
    %26 = vector.load %arg7[%c0_17, %c0_18] : memref<1x2xf32, #tpu.memory_space<vmem>>, vector<1x2xf32>
    %27 = vector.broadcast %26 : vector<1x2xf32> to vector<8x2xf32>
    %28 = arith.addf %25, %27 : vector<8x2xf32>
    %29 = arith.negf %28 : vector<8x2xf32>
    %30 = math.exp %29 : vector<8x2xf32>
    %cst_19 = arith.constant 1.000000e+00 : f32
    %31 = vector.broadcast %cst_19 : f32 to vector<8x2xf32>
    %32 = arith.addf %31, %30 : vector<8x2xf32>
    %33 = arith.divf %31, %32 : vector<8x2xf32>
    %34 = tpu.transpose %33, [1, 0] : vector<8x2xf32> -> vector<2x8xf32>
    %c0_20 = arith.constant 0 : index
    %c0_21 = arith.constant 0 : index
    %35 = vector.load %arg8[%c0_20, %c0_21] : memref<2x8xf32, #tpu.memory_space<vmem>>, vector<2x8xf32>
    tpu.vector_store %arg8[%c0_20, %c0_21], %34 {strides = array<i32>} : memref<2x8xf32, #tpu.memory_space<vmem>>, vector<2x8xf32>,
    return
  }
  func.func @transform_0(%arg0: i32) -> (i32, i32) {
    %c0_i32 = arith.constant 0 : i32
    %c0_i32_0 = arith.constant 0 : i32
    return %arg0, %c0_i32 : i32, i32
  }
  func.func @transform_1(%arg0: i32) -> (i32, i32) {
    %c0_i32 = arith.constant 0 : i32
    %c0_i32_0 = arith.constant 0 : i32
    %c0_i32_1 = arith.constant 0 : i32
    return %c0_i32, %c0_i32_0 : i32, i32
  }
  func.func @transform_2(%arg0: i32) -> (i32, i32) {
    %c0_i32 = arith.constant 0 : i32
    %c0_i32_0 = arith.constant 0 : i32
    %c0_i32_1 = arith.constant 0 : i32
    return %c0_i32, %c0_i32_0 : i32, i32
  }
  func.func @transform_3(%arg0: i32) -> (i32, i32) {
    %c0_i32 = arith.constant 0 : i32
    %c0_i32_0 = arith.constant 0 : i32
    %c0_i32_1 = arith.constant 0 : i32
    return %c0_i32, %c0_i32_0 : i32, i32
  }
  func.func @transform_4(%arg0: i32) -> (i32, i32) {
    %c0_i32 = arith.constant 0 : i32
    %c0_i32_0 = arith.constant 0 : i32
    %c0_i32_1 = arith.constant 0 : i32
    return %c0_i32, %c0_i32_0 : i32, i32
  }
  func.func @transform_5(%arg0: i32) -> (i32, i32) {
    %c0_i32 = arith.constant 0 : i32
    %c0_i32_0 = arith.constant 0 : i32
    %c0_i32_1 = arith.constant 0 : i32
    return %c0_i32, %c0_i32_0 : i32, i32
  }
  func.func @transform_6(%arg0: i32) -> (i32, i32) {
    %c0_i32 = arith.constant 0 : i32
    %c0_i32_0 = arith.constant 0 : i32
    %c0_i32_1 = arith.constant 0 : i32
    return %c0_i32, %c0_i32_0 : i32, i32
  }
  func.func @transform_7(%arg0: i32) -> (i32, i32) {
    %c0_i32 = arith.constant 0 : i32
    %c0_i32_0 = arith.constant 0 : i32
    return %c0_i32, %arg0 : i32, i32
  }
}

</mosaic_0001>

<llo_original>
// kernel: tpu_custom_call.1
$region0: #{tpu_custom_call.1}
  #allocation0 [shape = 'u32[]', space=smem, size = 0x4, offset = 0x4, fixed_abs, tag = 'smem constant byte address 0x4 - core index']
  #allocation1 [shape = 'u32[144,128]{1,0:T(1,128)}', space=vmem, size = 0x12000, scoped, tag = 'internal scratch']
  %s0 = inlined_call_operand.vmem [shape: f32[8,16], index: 0, kind: input, shape index: {}]
  %s1 = inlined_call_operand.hbm [shape: f32[16,32], index: 1, kind: input, shape index: {}]
  %s2 = inlined_call_operand.vmem [shape: f32[1,32], index: 2, kind: input, shape index: {}]
  %s3 = inlined_call_operand.vmem [shape: f32[32,64], index: 3, kind: input, shape index: {}]
  %s4 = inlined_call_operand.vmem [shape: f32[1,64], index: 4, kind: input, shape index: {}]
  %s5 = inlined_call_operand.vmem [shape: f32[32,2], index: 5, kind: input, shape index: {}]
  %s6 = inlined_call_operand.vmem [shape: f32[1,2], index: 6, kind: input, shape index: {}]
  %s7 = inlined_call_operand.hbm [shape: f32[2,8], index: 7, kind: output, shape index: {}]
  %s8 = sld [smem:[#allocation0]]
  $region42: #{tpu_custom_call.1} parent=0
    _
  %s10 = ssub.s32 1, %s8
  %s11 = scalar_select 0, %s10, %s8
  $region1: #{tpu_custom_call.1} parent=0
    #allocation2 [shape = 'u8[8192]{0}', space=vmem, size = 0x2000, scoped, tag = 'input window, operand 1, single buffered']
    #allocation3 [shape = 's32[1]{0}', space=sflag, size = 0x4, scoped, tag = 'scoped memory for tpu_custom_call.1']
    #allocation4 [shape = 's32[1]{0}', space=sflag, size = 0x4, scoped, tag = 'scoped memory for tpu_custom_call.1']
    #allocation5 [shape = 'u8[1024]{0}', space=vmem, size = 0x400, scoped, tag = 'output window, operand 0, single buffered']
    %12 = vsyncpa [#allocation3], 0
    %13 = vsyncpa [#allocation4], 0
    // Predicated region
    $region2: #{tpu_custom_call.1} parent=1 // pred_check
      _
    $region3: #{tpu_custom_call.1} parent=1 // pred_check_branch
      %15 = sbr.rel (0) target = $region5
    $region4: #{tpu_custom_call.1} parent=1 // pred_region
      _
    $region5: #{tpu_custom_call.1} parent=1 // pred_fallthru
      _
    // Predicated region
    $region6: #{tpu_custom_call.1} parent=1 // pred_check
      _
    $region7: #{tpu_custom_call.1} parent=1 // pred_check_branch
      %17 = sbr.rel (0) target = $region9
    $region8: #{tpu_custom_call.1} parent=1 // pred_region
      %s19 = ssub.s32 256, 256
      %20 = vsyncadd [#allocation3], %s19
      %s21 = sshll.u32 [#allocation2], 4
      %s22 = int_to_ptr.vmem [resolvable:$true] %s21
      %27 = dma.hbm_to_vmem [thread:$0]  %s1, 256, %s22, [#allocation3], 128, 128, 8
    $region9: #{tpu_custom_call.1} parent=1 // pred_fallthru
      _
    // Predicated region
    $region10: #{tpu_custom_call.1} parent=1 // pred_check
      _
    $region11: #{tpu_custom_call.1} parent=1 // pred_check_branch
      %29 = sbr.rel (0) target = $region13
    $region12: #{tpu_custom_call.1} parent=1 // pred_region
      _
    $region13: #{tpu_custom_call.1} parent=1 // pred_fallthru
      _
    // Predicated region
    $region14: #{tpu_custom_call.1} parent=1 // pred_check
      _
    $region15: #{tpu_custom_call.1} parent=1 // pred_check_branch
      %31 = sbr.rel (0) target = $region17
    $region16: #{tpu_custom_call.1} parent=1 // pred_region
      _
    $region17: #{tpu_custom_call.1} parent=1 // pred_fallthru
      _
    // Predicated region
    $region18: #{tpu_custom_call.1} parent=1 // pred_check
      _
    $region19: #{tpu_custom_call.1} parent=1 // pred_check_branch
      %33 = sbr.rel (0) target = $region21
    $region20: #{tpu_custom_call.1} parent=1 // pred_region
      _
    $region21: #{tpu_custom_call.1} parent=1 // pred_fallthru
      _
    // Predicated region
    $region22: #{tpu_custom_call.1} parent=1 // pred_check
      _
    $region23: #{tpu_custom_call.1} parent=1 // pred_check_branch
      %35 = sbr.rel (0) target = $region25
    $region24: #{tpu_custom_call.1} parent=1 // pred_region
      _
    $region25: #{tpu_custom_call.1} parent=1 // pred_fallthru
      _
    // Predicated region
    $region26: #{tpu_custom_call.1} parent=1 // pred_check
      _
    $region27: #{tpu_custom_call.1} parent=1 // pred_check_branch
      %37 = sbr.rel (0) target = $region29
    $region28: #{tpu_custom_call.1} parent=1 // pred_region
      _
    $region29: #{tpu_custom_call.1} parent=1 // pred_fallthru
      _
    // Predicated region
    $region30: #{tpu_custom_call.1} parent=1 // pred_check
      _
    $region31: #{tpu_custom_call.1} parent=1 // pred_check_branch
      %39 = sbr.rel (0) target = $region33
    $region32: #{tpu_custom_call.1} parent=1 // pred_region
      %40 = dma.done [#allocation3], 256
    $region33: #{tpu_custom_call.1} parent=1 // pred_fallthru
      _
    %v41 = vld [vmem:[%s0] sm:$0xff]
    %v42 = vld [vmem:[%s3] sm:$0xff]
    %v43 = vld [vmem:[%s3 + $0x8] sm:$0xff]
    %v44 = vld [vmem:[%s3 + $0x10] sm:$0xff]
    %v45 = vld [vmem:[%s3 + $0x18] sm:$0xff]
    %v46 = vld [vmem:[%s4] sm:$0x1]
    %v47 = vld [vmem:[#allocation2] sm:$0xff]
    %v48 = vld [vmem:[#allocation2 + $0x8] sm:$0xff]
    %v49 = vld [vmem:[%s2] sm:$0x1]
    %v51 = vlaneseq
    %v52 = vshrl.u32 %v51, 7
    %v53 = vsub.s32 0, %v52
    %v54 = vrot.slane %v49, %v53
    %vm56 = vcmask 130048
    %v58 = vsel %vm56, %v41, 0
    %60 = vmatprep.subr.mxu0 0.0
    %61 = vmatpush1.msra.mxu0 %v47
    %62 = vmatprep.subr.mxu0 0.0
    %63 = vmatpush1.msra.mxu0 %v48
    %64 = vmatprep.subr.mxu0 0.0
    %65 = vmatpush1.msra.mxu0 0.0
    %66 = vmatprep.subr.mxu0 0.0
    %67 = vmatpush1.msra.mxu0 0.0
    %68 = vmatprep.subr.mxu0 0.0
    %69 = vmatpush1.msra.mxu0 0.0
    %70 = vmatprep.subr.mxu0 0.0
    %71 = vmatpush1.msra.mxu0 0.0
    %72 = vmatprep.subr.mxu0 0.0
    %73 = vmatpush1.msra.mxu0 0.0
    %74 = vmatprep.subr.mxu0 0.0
    %75 = vmatpush1.msra.mxu0 0.0
    %76 = vmatprep.subr.mxu0 0.0
    %77 = vmatpush1.msra.mxu0 0.0
    %78 = vmatprep.subr.mxu0 0.0
    %79 = vmatpush1.msra.mxu0 0.0
    %80 = vmatprep.subr.mxu0 0.0
    %81 = vmatpush1.msra.mxu0 0.0
    %82 = vmatprep.subr.mxu0 0.0
    %83 = vmatpush1.msra.mxu0 0.0
    %84 = vmatprep.subr.mxu0 0.0
    %85 = vmatpush1.msra.mxu0 0.0
    %86 = vmatprep.subr.mxu0 0.0
    %87 = vmatpush1.msra.mxu0 0.0
    %88 = vmatprep.subr.mxu0 0.0
    %89 = vmatpush1.msra.mxu0 0.0
    %90 = vmatprep.subr.mxu0 0.0
    %91 = vmatpush1.msra.mxu0 0.0
    %92 = vmatprep.subr.mxu0 0.0
    %93 = vmatpush1.msra.mxu0 0.0
    %94 = vmatprep.subr.mxu0 0.0
    %95 = vmatpush1.msra.mxu0 0.0
    %96 = vmatprep.subr.mxu0 0.0
    %97 = vmatpush1.msra.mxu0 0.0
    %98 = vmatprep.subr.mxu0 0.0
    %99 = vmatpush1.msra.mxu0 0.0
    %100 = vmatprep.subr.mxu0 0.0
    %101 = vmatpush1.msra.mxu0 0.0
    %102 = vmatprep.subr.mxu0 0.0
    %103 = vmatpush1.msra.mxu0 0.0
    %104 = vmatprep.subr.mxu0 0.0
    %105 = vmatpush1.msra.mxu0 0.0
    %106 = vmatprep.subr.mxu0 0.0
    %107 = vmatpush1.msra.mxu0 0.0
    %108 = vmatprep.subr.mxu0 0.0
    %109 = vmatpush1.msra.mxu0 0.0
    %110 = vmatprep.subr.mxu0 0.0
    %111 = vmatpush1.msra.mxu0 0.0
    %112 = vmatprep.subr.mxu0 0.0
    %113 = vmatpush1.msra.mxu0 0.0
    %114 = vmatprep.subr.mxu0 0.0
    %115 = vmatpush1.msra.mxu0 0.0
    %116 = vmatprep.subr.mxu0 0.0
    %117 = vmatpush1.msra.mxu0 0.0
    %118 = vmatprep.subr.mxu0 0.0
    %119 = vmatpush1.msra.mxu0 0.0
    %120 = vmatprep.subr.mxu0 0.0
    %121 = vmatpush1.msra.mxu0 0.0
    %122 = vmatprep.subr.mxu0 0.0
    %123 = vmatpush1.msra.mxu0 0.0
    %124 = vmatprep.mubr.f32.mxu0 0.0
    %125 = vmatmul.mubr.f32.gmra.mrb[0].mxu0 %v58
    %v126 = vpop.f32.mrb[0].mxu0
    %v127 = vadd.f32 %v54, %v126
    %v128 = vpop.f32.mrb[0].mxu0
    %129 = vdwg.mxu0
    %v130 = vmax.f32 %v127, 0.0
    %v132 = vlaneseq
    %v133 = vshrl.u32 %v132, 7
    %v134 = vsub.s32 0, %v133
    %v135 = vrot.slane %v46, %v134
    %vm137 = vcmask 261120
    %v139 = vsel %vm137, %v130, 0
    %141 = vmatprep.subr.mxu0 0.0
    %142 = vmatpush1.msra.mxu0 %v42
    %143 = vmatprep.subr.mxu0 0.0
    %144 = vmatpush1.msra.mxu0 %v43
    %145 = vmatprep.subr.mxu0 0.0
    %146 = vmatpush1.msra.mxu0 %v44
    %147 = vmatprep.subr.mxu0 0.0
    %148 = vmatpush1.msra.mxu0 %v45
    %149 = vmatprep.subr.mxu0 0.0
    %150 = vmatpush1.msra.mxu0 0.0
    %151 = vmatprep.subr.mxu0 0.0
    %152 = vmatpush1.msra.mxu0 0.0
    %153 = vmatprep.subr.mxu0 0.0
    %154 = vmatpush1.msra.mxu0 0.0
    %155 = vmatprep.subr.mxu0 0.0
    %156 = vmatpush1.msra.mxu0 0.0
    %157 = vmatprep.subr.mxu0 0.0
    %158 = vmatpush1.msra.mxu0 0.0
    %159 = vmatprep.subr.mxu0 0.0
    %160 = vmatpush1.msra.mxu0 0.0
    %161 = vmatprep.subr.mxu0 0.0
    %162 = vmatpush1.msra.mxu0 0.0
    %163 = vmatprep.subr.mxu0 0.0
    %164 = vmatpush1.msra.mxu0 0.0
    %165 = vmatprep.subr.mxu0 0.0
    %166 = vmatpush1.msra.mxu0 0.0
    %167 = vmatprep.subr.mxu0 0.0
    %168 = vmatpush1.msra.mxu0 0.0
    %169 = vmatprep.subr.mxu0 0.0
    %170 = vmatpush1.msra.mxu0 0.0
    %171 = vmatprep.subr.mxu0 0.0
    %172 = vmatpush1.msra.mxu0 0.0
    %173 = vmatprep.subr.mxu0 0.0
    %174 = vmatpush1.msra.mxu0 0.0
    %175 = vmatprep.subr.mxu0 0.0
    %176 = vmatpush1.msra.mxu0 0.0
    %177 = vmatprep.subr.mxu0 0.0
    %178 = vmatpush1.msra.mxu0 0.0
    %179 = vmatprep.subr.mxu0 0.0
    %180 = vmatpush1.msra.mxu0 0.0
    %181 = vmatprep.subr.mxu0 0.0
    %182 = vmatpush1.msra.mxu0 0.0
    %183 = vmatprep.subr.mxu0 0.0
    %184 = vmatpush1.msra.mxu0 0.0
    %185 = vmatprep.subr.mxu0 0.0
    %186 = vmatpush1.msra.mxu0 0.0
    %187 = vmatprep.subr.mxu0 0.0
    %188 = vmatpush1.msra.mxu0 0.0
    %189 = vmatprep.subr.mxu0 0.0
    %190 = vmatpush1.msra.mxu0 0.0
    %191 = vmatprep.subr.mxu0 0.0
    %192 = vmatpush1.msra.mxu0 0.0
    %193 = vmatprep.subr.mxu0 0.0
    %194 = vmatpush1.msra.mxu0 0.0
    %195 = vmatprep.subr.mxu0 0.0
    %196 = vmatpush1.msra.mxu0 0.0
    %197 = vmatprep.subr.mxu0 0.0
    %198 = vmatpush1.msra.mxu0 0.0
    %199 = vmatprep.subr.mxu0 0.0
    %200 = vmatpush1.msra.mxu0 0.0
    %201 = vmatprep.subr.mxu0 0.0
    %202 = vmatpush1.msra.mxu0 0.0
    %203 = vmatprep.subr.mxu0 0.0
    %204 = vmatpush1.msra.mxu0 0.0
    %205 = vmatprep.mubr.f32.mxu0 0.0
    %206 = vmatmul.mubr.f32.gmra.mrb[0].mxu0 %v139
    %v207 = vpop.f32.mrb[0].mxu0
    %v208 = vadd.f32 %v135, %v207
    %v209 = vpop.f32.mrb[0].mxu0
    %210 = vdwg.mxu0
    %v211 = vmax.f32 %v208, 0.0
    %216 = vrot.lane.b32.xlu0 %v42, 96
    %v217 = vpop.permute.xlu0 %216
    %218 = vrot.lane.b32.xlu0 %v43, 96
    %v219 = vpop.permute.xlu0 %218
    %220 = vrot.lane.b32.xlu0 %v44, 96
    %v221 = vpop.permute.xlu0 %220
    %222 = vrot.lane.b32.xlu0 %v45, 96
    %v223 = vpop.permute.xlu0 %222
    %228 = vrot.lane.b32.xlu0 %v135, 96
    %v229 = vpop.permute.xlu0 %228
    %v232 = vsel %vm137, %v211, 0
    %234 = vmatprep.subr.mxu0 0.0
    %235 = vmatpush1.msra.mxu0 %v217
    %236 = vmatprep.subr.mxu0 0.0
    %237 = vmatpush1.msra.mxu0 %v219
    %238 = vmatprep.subr.mxu0 0.0
    %239 = vmatpush1.msra.mxu0 %v221
    %240 = vmatprep.subr.mxu0 0.0
    %241 = vmatpush1.msra.mxu0 %v223
    %242 = vmatprep.subr.mxu0 0.0
    %243 = vmatpush1.msra.mxu0 0.0
    %244 = vmatprep.subr.mxu0 0.0
    %245 = vmatpush1.msra.mxu0 0.0
    %246 = vmatprep.subr.mxu0 0.0
    %247 = vmatpush1.msra.mxu0 0.0
    %248 = vmatprep.subr.mxu0 0.0
    %249 = vmatpush1.msra.mxu0 0.0
    %250 = vmatprep.subr.mxu0 0.0
    %251 = vmatpush1.msra.mxu0 0.0
    %252 = vmatprep.subr.mxu0 0.0
    %253 = vmatpush1.msra.mxu0 0.0
    %254 = vmatprep.subr.mxu0 0.0
    %255 = vmatpush1.msra.mxu0 0.0
    %256 = vmatprep.subr.mxu0 0.0
    %257 = vmatpush1.msra.mxu0 0.0
    %258 = vmatprep.subr.mxu0 0.0
    %259 = vmatpush1.msra.mxu0 0.0
    %260 = vmatprep.subr.mxu0 0.0
    %261 = vmatpush1.msra.mxu0 0.0
    %262 = vmatprep.subr.mxu0 0.0
    %263 = vmatpush1.msra.mxu0 0.0
    %264 = vmatprep.subr.mxu0 0.0
    %265 = vmatpush1.msra.mxu0 0.0
    %266 = vmatprep.subr.mxu0 0.0
    %267 = vmatpush1.msra.mxu0 0.0
    %268 = vmatprep.subr.mxu0 0.0
    %269 = vmatpush1.msra.mxu0 0.0
    %270 = vmatprep.subr.mxu0 0.0
    %271 = vmatpush1.msra.mxu0 0.0
    %272 = vmatprep.subr.mxu0 0.0
    %273 = vmatpush1.msra.mxu0 0.0
    %274 = vmatprep.subr.mxu0 0.0
    %275 = vmatpush1.msra.mxu0 0.0
    %276 = vmatprep.subr.mxu0 0.0
    %277 = vmatpush1.msra.mxu0 0.0
    %278 = vmatprep.subr.mxu0 0.0
    %279 = vmatpush1.msra.mxu0 0.0
    %280 = vmatprep.subr.mxu0 0.0
    %281 = vmatpush1.msra.mxu0 0.0
    %282 = vmatprep.subr.mxu0 0.0
    %283 = vmatpush1.msra.mxu0 0.0
    %284 = vmatprep.subr.mxu0 0.0
    %285 = vmatpush1.msra.mxu0 0.0
    %286 = vmatprep.subr.mxu0 0.0
    %287 = vmatpush1.msra.mxu0 0.0
    %288 = vmatprep.subr.mxu0 0.0
    %289 = vmatpush1.msra.mxu0 0.0
    %290 = vmatprep.subr.mxu0 0.0
    %291 = vmatpush1.msra.mxu0 0.0
    %292 = vmatprep.subr.mxu0 0.0
    %293 = vmatpush1.msra.mxu0 0.0
    %294 = vmatprep.subr.mxu0 0.0
    %295 = vmatpush1.msra.mxu0 0.0
    %296 = vmatprep.subr.mxu0 0.0
    %297 = vmatpush1.msra.mxu0 0.0
    %298 = vmatprep.mubr.f32.mxu0 0.0
    %299 = vmatmul.mubr.f32.gmra.mrb[0].mxu0 %v232
    %v300 = vpop.f32.mrb[0].mxu0
    %v301 = vadd.f32 %v229, %v300
    %v302 = vpop.f32.mrb[0].mxu0
    %303 = vdwg.mxu0
    %v304 = vmax.f32 %v301, 0.0
    %v305 = vld [vmem:[%s5] sm:$0xff]
    %v306 = vld [vmem:[%s5 + $0x8] sm:$0xff]
    %v307 = vld [vmem:[%s5 + $0x10] sm:$0xff]
    %v308 = vld [vmem:[%s5 + $0x18] sm:$0xff]
    %v309 = vld [vmem:[%s6] sm:$0x1]
    %v311 = vlaneseq
    %v312 = vshrl.u32 %v311, 7
    %v313 = vsub.s32 0, %v312
    %v314 = vrot.slane %v309, %v313
    %v317 = vsel %vm137, %v304, 0
    %319 = vmatprep.subr.mxu0 0.0
    %320 = vmatpush1.msra.mxu0 %v305
    %321 = vmatprep.subr.mxu0 0.0
    %322 = vmatpush1.msra.mxu0 %v306
    %323 = vmatprep.subr.mxu0 0.0
    %324 = vmatpush1.msra.mxu0 %v307
    %325 = vmatprep.subr.mxu0 0.0
    %326 = vmatpush1.msra.mxu0 %v308
    %327 = vmatprep.subr.mxu0 0.0
    %328 = vmatpush1.msra.mxu0 0.0
    %329 = vmatprep.subr.mxu0 0.0
    %330 = vmatpush1.msra.mxu0 0.0
    %331 = vmatprep.subr.mxu0 0.0
    %332 = vmatpush1.msra.mxu0 0.0
    %333 = vmatprep.subr.mxu0 0.0
    %334 = vmatpush1.msra.mxu0 0.0
    %335 = vmatprep.subr.mxu0 0.0
    %336 = vmatpush1.msra.mxu0 0.0
    %337 = vmatprep.subr.mxu0 0.0
    %338 = vmatpush1.msra.mxu0 0.0
    %339 = vmatprep.subr.mxu0 0.0
    %340 = vmatpush1.msra.mxu0 0.0
    %341 = vmatprep.subr.mxu0 0.0
    %342 = vmatpush1.msra.mxu0 0.0
    %343 = vmatprep.subr.mxu0 0.0
    %344 = vmatpush1.msra.mxu0 0.0
    %345 = vmatprep.subr.mxu0 0.0
    %346 = vmatpush1.msra.mxu0 0.0
    %347 = vmatprep.subr.mxu0 0.0
    %348 = vmatpush1.msra.mxu0 0.0
    %349 = vmatprep.subr.mxu0 0.0
    %350 = vmatpush1.msra.mxu0 0.0
    %351 = vmatprep.subr.mxu0 0.0
    %352 = vmatpush1.msra.mxu0 0.0
    %353 = vmatprep.subr.mxu0 0.0
    %354 = vmatpush1.msra.mxu0 0.0
    %355 = vmatprep.subr.mxu0 0.0
    %356 = vmatpush1.msra.mxu0 0.0
    %357 = vmatprep.subr.mxu0 0.0
    %358 = vmatpush1.msra.mxu0 0.0
    %359 = vmatprep.subr.mxu0 0.0
    %360 = vmatpush1.msra.mxu0 0.0
    %361 = vmatprep.subr.mxu0 0.0
    %362 = vmatpush1.msra.mxu0 0.0
    %363 = vmatprep.subr.mxu0 0.0
    %364 = vmatpush1.msra.mxu0 0.0
    %365 = vmatprep.subr.mxu0 0.0
    %366 = vmatpush1.msra.mxu0 0.0
    %367 = vmatprep.subr.mxu0 0.0
    %368 = vmatpush1.msra.mxu0 0.0
    %369 = vmatprep.subr.mxu0 0.0
    %370 = vmatpush1.msra.mxu0 0.0
    %371 = vmatprep.subr.mxu0 0.0
    %372 = vmatpush1.msra.mxu0 0.0
    %373 = vmatprep.subr.mxu0 0.0
    %374 = vmatpush1.msra.mxu0 0.0
    %375 = vmatprep.subr.mxu0 0.0
    %376 = vmatpush1.msra.mxu0 0.0
    %377 = vmatprep.subr.mxu0 0.0
    %378 = vmatpush1.msra.mxu0 0.0
    %379 = vmatprep.subr.mxu0 0.0
    %380 = vmatpush1.msra.mxu0 0.0
    %381 = vmatprep.subr.mxu0 0.0
    %382 = vmatpush1.msra.mxu0 0.0
    %383 = vmatprep.mubr.f32.mxu0 0.0
    %384 = vmatmul.mubr.f32.gmra.mrb[0].mxu0 %v317
    %v385 = vpop.f32.mrb[0].mxu0
    %v386 = vadd.f32 %v314, %v385
    %v387 = vpop.f32.mrb[0].mxu0
    %388 = vdwg.mxu0
    %v389 = vxor.u32 %v386, 2147483648
    %v390 = vmul.f32 %v389, 1.442695
    %v391 = vpow.pop %v390
    %v392 = vadd.f32 %v391, 1.0
    %v393 = vrcp.pop %v392
    %v394 = vmul.f32 1.0, %v393
    %395 = vxpose.xlu0.b32.start [1/16] %v394, 128
    %396 = vxpose.xlu0.b32.cont [2/16] 0.0, 128
    %397 = vxpose.xlu0.b32.cont [3/16] 0.0, 128
    %398 = vxpose.xlu0.b32.cont [4/16] 0.0, 128
    %399 = vxpose.xlu0.b32.cont [5/16] 0.0, 128
    %400 = vxpose.xlu0.b32.cont [6/16] 0.0, 128
    %401 = vxpose.xlu0.b32.cont [7/16] 0.0, 128
    %402 = vxpose.xlu0.b32.cont [8/16] 0.0, 128
    %403 = vxpose.xlu0.b32.cont [9/16] 0.0, 128
    %404 = vxpose.xlu0.b32.cont [10/16] 0.0, 128
    %405 = vxpose.xlu0.b32.cont [11/16] 0.0, 128
    %406 = vxpose.xlu0.b32.cont [12/16] 0.0, 128
    %407 = vxpose.xlu0.b32.cont [13/16] 0.0, 128
    %408 = vxpose.xlu0.b32.cont [14/16] 0.0, 128
    %409 = vxpose.xlu0.b32.cont [15/16] 0.0, 128
    %410 = vxpose.xlu0.b32.end [16/16] 0.0, 128
    %v411 = vpop.trf.xlu0
    %v412 = vpop.trf.xlu0
    %v413 = vpop.trf.xlu0
    %v414 = vpop.trf.xlu0
    %v415 = vpop.trf.xlu0
    %v416 = vpop.trf.xlu0
    %v417 = vpop.trf.xlu0
    %v418 = vpop.trf.xlu0
    %v419 = vpop.trf.xlu0
    %v420 = vpop.trf.xlu0
    %v421 = vpop.trf.xlu0
    %v422 = vpop.trf.xlu0
    %v423 = vpop.trf.xlu0
    %v424 = vpop.trf.xlu0
    %v425 = vpop.trf.xlu0
    %v426 = vpop.trf.xlu0
    %vm427 = vcmask 58368
    %428 = vst.msk [vmem:[#allocation5] sm:$0x3] %vm427, %v411
    // Predicated region
    $region34: #{tpu_custom_call.1} parent=1 // pred_check
      _
    $region35: #{tpu_custom_call.1} parent=1 // pred_check_branch
      %430 = sbr.rel (0) target = $region37
    $region36: #{tpu_custom_call.1} parent=1 // pred_region
      %s432 = ssub.s32 32, 32
      %433 = vsyncadd [#allocation4], %s432
      %s435 = sshll.u32 [#allocation5], 4
      %s436 = int_to_ptr.vmem [resolvable:$true] %s435
      %438 = dma.vmem_to_hbm [thread:$0]  %s436, 32, %s7, [#allocation4]
    $region37: #{tpu_custom_call.1} parent=1 // pred_fallthru
      _
    // Predicated region
    $region38: #{tpu_custom_call.1} parent=1 // pred_check
      _
    $region39: #{tpu_custom_call.1} parent=1 // pred_check_branch
      %440 = sbr.rel (0) target = $region41
    $region40: #{tpu_custom_call.1} parent=1 // pred_region
      %441 = dma.done [#allocation4], 32
    $region41: #{tpu_custom_call.1} parent=1 // pred_fallthru
      _
    %442 = vsyncpa [#allocation3], 1
    %443 = vsyncpa [#allocation4], 1

</llo_original>
